<compile_context>
chip_gen: v7x
topology: tpu7x:2x2x1
jax: 0.10.0
libtpu: 0.0.40
codegen_flags: <defaults>
</compile_context>

<pallas_src>
import functools

import jax
import jax.numpy as jnp
from jax.experimental import pallas as pl
from jax.experimental.pallas import tpu as pltpu


# ----------------------------------------------------------------------------
# Pallas kernels
# ----------------------------------------------------------------------------
def _conv3x3_bn_relu_kernel(*refs, TH, W, cout_chunk, rows_chunk, fuse_pool,
                            has_halo):
    """One (batch, row-strip) tile: 3x3 conv + folded BN + ReLU (+ fused pool).

    Refs (in order):
      xa_ref : (1, TH, W+2, Cin) bf16   (or (1, TH+2, W+2, Cin) when no halo)
      xh_ref : (1, 2,  W+2, Cin) bf16   bottom 2-row halo      [only if has_halo]
      w_ref  : (3, 3*Cin, Cout)  bf16   weights, kh-major, (kw,cin) contracted
      s_ref  : (1, Cout)         f32    folded BN scale
      b_ref  : (1, Cout)         f32    folded BN bias
      o_ref  : (1, TH, W, Cout)  bf16
      p_ref  : (1, TH//2, W//2, Cout) bf16                     [only if fuse_pool]
    """
    if has_halo:
        xa_ref, xh_ref, w_ref, s_ref, b_ref, *out_refs = refs
    else:
        xa_ref, w_ref, s_ref, b_ref, *out_refs = refs
        xh_ref = None
    o_ref = out_refs[0]
    p_ref = out_refs[1] if fuse_pool else None

    cin = xa_ref.shape[-1]
    cout = o_ref.shape[-1]
    k3 = 3 * cin

    # Fold the kw taps into the contraction dim, once per strip:
    #   (R, W+2, Cin) -> (R, W, 3*Cin); channel order (kw, cin) matches w_ref.
    def im2col_kw(x):
        return jnp.concatenate(
            [x[:, 0:W, :], x[:, 1:W + 1, :], x[:, 2:W + 2, :]], axis=-1)

    pa = im2col_kw(xa_ref[0])                        # (TH or TH+2, W, 3*Cin)
    ph = im2col_kw(xh_ref[0]) if has_halo else None  # (2, W, 3*Cin)
    ra = pa.shape[0]

    def get_patch(start, count):
        """Rows [start, start+count) of the conceptual (TH+2)-row patch strip."""
        if start + count <= ra:
            return pa[start:start + count]
        if start >= ra:
            return ph[start - ra:start - ra + count]
        na = ra - start
        return jnp.concatenate([pa[start:], ph[:count - na]], axis=0)

    # cout-chunk outer (weight slices stationary across row-chunks), row-chunk
    # middle, the 3 kh taps innermost into a small f32 accumulator.
    for c0 in range(0, cout, cout_chunk):
        cc = min(cout_chunk, cout - c0)
        wk = [w_ref[kh, :, c0:c0 + cc] for kh in range(3)]   # 3 x (3Cin, cc)
        s = s_ref[0, c0:c0 + cc]
        b = b_ref[0, c0:c0 + cc]
        for r0 in range(0, TH, rows_chunk):
            rc = min(rows_chunk, TH - r0)
            acc = jnp.zeros((rc * W, cc), jnp.float32)
            for kh in range(3):
                patch = get_patch(r0 + kh, rc).reshape(rc * W, k3)
                acc = acc + jnp.dot(patch, wk[kh],
                                    preferred_element_type=jnp.float32)
            y = jnp.maximum(acc * s + b, 0.0)                 # BN + ReLU (f32)
            y3 = y.reshape(rc, W, cc)
            o_ref[0, r0:r0 + rc, :, c0:c0 + cc] = y3.astype(o_ref.dtype)
            if fuse_pool:
                # 2x2 / stride-2 max pool straight from the f32 epilogue.
                pooled = jnp.maximum(
                    jnp.maximum(y3[0::2, 0::2, :], y3[0::2, 1::2, :]),
                    jnp.maximum(y3[1::2, 0::2, :], y3[1::2, 1::2, :]))
                p_ref[0, r0 // 2:(r0 + rc) // 2, :, c0:c0 + cc] = (
                    pooled.astype(p_ref.dtype))


def _mm_bn_relu_kernel(x_ref, w_ref, s_ref, b_ref, o_ref, *, TH, W, rows_chunk):
    """im2col matmul + folded BN + ReLU (used for conv1_1, K = 9*Cin = 27)."""
    k = x_ref.shape[-1]
    cout = o_ref.shape[-1]
    for r0 in range(0, TH, rows_chunk):
        rc = min(rows_chunk, TH - r0)
        xm = x_ref[0, r0:r0 + rc, :, :].reshape(rc * W, k)
        acc = jnp.dot(xm, w_ref[...], preferred_element_type=jnp.float32)
        y = jnp.maximum(acc * s_ref[0] + b_ref[0], 0.0)
        o_ref[0, r0:r0 + rc, :, :] = y.reshape(rc, W, cout).astype(o_ref.dtype)


# ----------------------------------------------------------------------------
# Tiling / budget helpers
# ----------------------------------------------------------------------------
_PHYS_VMEM_FALLBACK = 64 * 1024 * 1024   # assume the smallest part (v7x)


@functools.lru_cache(maxsize=1)
def _vmem_budget_bytes():
    try:
        cap = int(getattr(pltpu.get_tpu_info(), "vmem_capacity_bytes",
                          _PHYS_VMEM_FALLBACK))
    except Exception:  # pragma: no cover - conservative fallback
        cap = _PHYS_VMEM_FALLBACK
    # Leave headroom for Mosaic's own scratch; cap at 100 MiB on 128 MiB parts.
    return max(32 * 1024 * 1024, min(cap - 16 * 1024 * 1024, 100 * 1024 * 1024))


def _strip_vmem_bytes(th, w, cin, cout, pool, halo):
    wp = w + 2
    inb = (th + 2) * wp * cin * 2
    halob = 2 * wp * cin * 2 if halo else 0
    wb = 9 * cin * cout * 2
    outb = th * w * cout * 2
    poolb = (th // 2) * (w // 2) * cout * 2 if pool else 0
    pa = (th + 2) * w * 3 * cin * 2          # in-kernel folded-kw patch strip
    misc = 1 * 1024 * 1024                   # accumulators / epilogue slack
    return 2 * (inb + halob + wb + outb + poolb) + pa + misc


def _pick_th(h, w, cin, cout, pool, budget, th_cap=None):
    """Largest strip height (<= cap) dividing H that fits the VMEM budget.

    th must be even whenever the layer needs a halo block (th < h); a single
    strip (th == h) needs no halo and may be odd.
    """
    cap = min(h, th_cap if th_cap is not None else 32)
    cands = [t for t in range(cap, 0, -1)
             if h % t == 0 and (t % 2 == 0 or t == h)]
    if not cands:
        # TODO(synk): odd/prime H larger than the cap -> single strip; may
        # exceed the budget for very large odd H (never a VGG shape).
        return h
    target = int(0.6 * budget)
    for t in cands:
        if _strip_vmem_bytes(t, w, cin, cout, pool, halo=(t < h)) <= target:
            return t
    return cands[-1]


def _pick_th_simple(h, cap=32):
    for t in range(min(h, cap), 0, -1):
        if h % t == 0:
            return t
    return h


# ----------------------------------------------------------------------------
# Wrappers
# ----------------------------------------------------------------------------
def conv_bn_relu(x, p, pool=False, th_cap=None):
    """x: (N,H,W,Cin) bf16; p: {'w':(3,3,Cin,Cout), 'scale','bias':(Cout,)}."""
    w, scale, bias = p["w"], p["scale"], p["bias"]
    n, h, wdt, cin = x.shape
    cout = w.shape[-1]
    if pool:
        assert h % 2 == 0 and wdt % 2 == 0

    budget = _vmem_budget_bytes()
    th = _pick_th(h, wdt, cin, cout, pool, budget, th_cap)
    nh = h // th
    has_halo = nh > 1
    wp = wdt + 2

    xp = jnp.pad(x.astype(jnp.bfloat16), ((0, 0), (1, 1), (1, 1), (0, 0)))
    # (3,3,Cin,Cout) -> (kh, kw*Cin + cin, Cout): kw folded into contraction.
    w3 = w.reshape(3, 3 * cin, cout).astype(jnp.bfloat16)
    s2 = scale.reshape(1, cout).astype(jnp.float32)
    b2 = bias.reshape(1, cout).astype(jnp.float32)

    cout_chunk = min(cout, 256)                      # fill 256-wide MXU N dim
    rows_chunk = max(1, (128 * 1024) // (4 * wdt * cout_chunk))  # acc <=128KiB
    rows_chunk = min(rows_chunk, th)
    if pool:
        rows_chunk = min(th, max(2, rows_chunk - (rows_chunk % 2)))

    kernel = functools.partial(
        _conv3x3_bn_relu_kernel, TH=th, W=wdt, cout_chunk=cout_chunk,
        rows_chunk=rows_chunk, fuse_pool=pool, has_halo=has_halo)

    if has_halo:
        x_specs = [
            pl.BlockSpec((1, th, wp, cin), lambda nn, i: (nn, i, 0, 0)),
            # Single 2-row bottom-halo block (th is even whenever nh > 1).
            pl.BlockSpec((1, 2, wp, cin),
                         lambda nn, i, th=th: (nn, (i + 1) * th // 2, 0, 0)),
        ]
        x_args = [xp, xp]
    else:
        x_specs = [pl.BlockSpec((1, h + 2, wp, cin),
                                lambda nn, i: (nn, 0, 0, 0))]
        x_args = [xp]

    in_specs = x_specs + [
        pl.BlockSpec((3, 3 * cin, cout), lambda nn, i: (0, 0, 0)),
        pl.BlockSpec((1, cout), lambda nn, i: (0, 0)),
        pl.BlockSpec((1, cout), lambda nn, i: (0, 0)),
    ]
    y_spec = pl.BlockSpec((1, th, wdt, cout), lambda nn, i: (nn, i, 0, 0))
    y_shape = jax.ShapeDtypeStruct((n, h, wdt, cout), jnp.bfloat16)

    if pool:
        p_spec = pl.BlockSpec((1, th // 2, wdt // 2, cout),
                              lambda nn, i: (nn, i, 0, 0))
        p_shape = jax.ShapeDtypeStruct((n, h // 2, wdt // 2, cout),
                                       jnp.bfloat16)
        out_shape, out_specs = (y_shape, p_shape), (y_spec, p_spec)
    else:
        out_shape, out_specs = y_shape, y_spec

    out_bytes = n * h * wdt * cout * 2
    if pool:
        out_bytes += n * (h // 2) * (wdt // 2) * cout * 2
    cost = pl.CostEstimate(
        flops=2 * n * h * wdt * 9 * cin * cout,
        transcendentals=0,
        bytes_accessed=int(xp.size) * 2 + int(w3.size) * 2
        + (int(s2.size) + int(b2.size)) * 4 + out_bytes)

    outs = pl.pallas_call(
        kernel,
        out_shape=out_shape,
        grid=(n, nh),
        in_specs=in_specs,
        out_specs=out_specs,
        compiler_params=pltpu.CompilerParams(
            dimension_semantics=("parallel", "parallel"),
            vmem_limit_bytes=budget,
        ),
        cost_estimate=cost,
    )(*x_args, w3, s2, b2)

    if pool:
        return outs[0], outs[1]
    return outs


def matmul_bn_relu(x, w, scale, bias):
    """x: (N,H,W,K) bf16; w: (K,Cout); used for the im2col'd conv1_1."""
    n, h, wdt, k = x.shape
    cout = w.shape[-1]
    th = _pick_th_simple(h)
    nh = h // th
    rows_chunk = max(1, min(th, (128 * 1024) // (4 * wdt * cout)))
    budget = _vmem_budget_bytes()

    kernel = functools.partial(_mm_bn_relu_kernel, TH=th, W=wdt,
                               rows_chunk=rows_chunk)
    cost = pl.CostEstimate(
        flops=2 * n * h * wdt * k * cout,
        transcendentals=0,
        bytes_accessed=n * h * wdt * k * 2 + k * cout * 2
        + n * h * wdt * cout * 2 + cout * 8)
    return pl.pallas_call(
        kernel,
        out_shape=jax.ShapeDtypeStruct((n, h, wdt, cout), jnp.bfloat16),
        grid=(n, nh),
        in_specs=[
            pl.BlockSpec((1, th, wdt, k), lambda nn, i: (nn, i, 0, 0)),
            pl.BlockSpec((k, cout), lambda nn, i: (0, 0)),
            pl.BlockSpec((1, cout), lambda nn, i: (0, 0)),
            pl.BlockSpec((1, cout), lambda nn, i: (0, 0)),
        ],
        out_specs=pl.BlockSpec((1, th, wdt, cout), lambda nn, i: (nn, i, 0, 0)),
        compiler_params=pltpu.CompilerParams(
            dimension_semantics=("parallel", "parallel"),
            vmem_limit_bytes=budget,
        ),
        cost_estimate=cost,
    )(x.astype(jnp.bfloat16), w.astype(jnp.bfloat16),
      scale.reshape(1, cout).astype(jnp.float32),
      bias.reshape(1, cout).astype(jnp.float32))


def _im2col3x3(x):
    """(N,H,W,C) -> (N,H,W,9C), tap-major (kh,kw,c) channel order."""
    n, h, w, c = x.shape
    xp = jnp.pad(x, ((0, 0), (1, 1), (1, 1), (0, 0)))
    cols = [xp[:, kh:kh + h, kw:kw + w, :] for kh in range(3) for kw in range(3)]
    return jnp.concatenate(cols, axis=-1)


# ----------------------------------------------------------------------------
# Parameters (deterministic, synthetic; BN folded for eval mode)
# ----------------------------------------------------------------------------
_LAYER_NAMES = ["1_1", "1_2", "2_1", "2_2", "3_1", "3_2", "3_3",
                "4_1", "4_2", "4_3", "5_1", "5_2", "5_3"]
_LAYER_CFG = [(3, 64), (64, 64), (64, 128), (128, 128),
              (128, 256), (256, 256), (256, 256),
              (256, 512), (512, 512), (512, 512),
              (512, 512), (512, 512), (512, 512)]
_BN_EPS = 1e-5


def init_params(key):
    params = {}
    for name, (cin, cout) in zip(_LAYER_NAMES, _LAYER_CFG):
        key, kw, kb, kg, kbe, km, kv = jax.random.split(key, 7)
        w = jax.random.normal(kw, (3, 3, cin, cout), jnp.float32) * jnp.sqrt(
            2.0 / (9.0 * cin))
        conv_b = 0.01 * jax.random.normal(kb, (cout,), jnp.float32)
        gamma = 1.0 + 0.1 * jax.random.normal(kg, (cout,), jnp.float32)
        beta = 0.01 * jax.random.normal(kbe, (cout,), jnp.float32)
        mean = 0.01 * jax.random.normal(km, (cout,), jnp.float32)
        var = 0.5 + jax.random.uniform(kv, (cout,), jnp.float32)
        scale = gamma / jnp.sqrt(var + _BN_EPS)        # fold eval-mode BN
        bias = beta + (conv_b - mean) * scale
        params[name] = {"w": w, "scale": scale, "bias": bias}
    return params


# ----------------------------------------------------------------------------
# Forward pass (mirrors VGG16_backbone.forward)
# ----------------------------------------------------------------------------
def vgg16_backbone_forward(x_nchw, params):
    x = jnp.transpose(x_nchw, (0, 2, 3, 1)).astype(jnp.bfloat16)   # NCHW->NHWC

    # conv1_1 via im2col (Cin=3 -> K=27 single MXU matmul)
    p = params["1_1"]
    x = matmul_bn_relu(_im2col3x3(x), p["w"].reshape(-1, p["w"].shape[-1]),
                       p["scale"], p["bias"])

    conv1_2, x = conv_bn_relu(x, params["1_2"], pool=True)
    x = conv_bn_relu(x, params["2_1"])
    conv2_2, x = conv_bn_relu(x, params["2_2"], pool=True)
    x = conv_bn_relu(x, params["3_1"])
    x = conv_bn_relu(x, params["3_2"])
    conv3_3, x = conv_bn_relu(x, params["3_3"], pool=True)
    x = conv_bn_relu(x, params["4_1"])
    x = conv_bn_relu(x, params["4_2"])
    conv4_3, x = conv_bn_relu(x, params["4_3"], pool=True)
    x = conv_bn_relu(x, params["5_1"])
    x = conv_bn_relu(x, params["5_2"])
    conv5_3 = conv_bn_relu(x, params["5_3"])

    to_nchw = lambda t: jnp.transpose(t.astype(jnp.float32), (0, 3, 1, 2))
    return (to_nchw(conv1_2), to_nchw(conv2_2), to_nchw(conv3_3),
            to_nchw(conv4_3), to_nchw(conv5_3))


# ----------------------------------------------------------------------------
# Pure-JAX reference (same bf16 layer boundaries) for a numerics self-check
# ----------------------------------------------------------------------------
def _ref_forward(x_nchw, params):
    x = jnp.transpose(x_nchw, (0, 2, 3, 1)).astype(jnp.bfloat16)

    def conv(t, name):
        p = params[name]
        w = p["w"].astype(jnp.bfloat16).astype(jnp.float32)
        y = jax.lax.conv_general_dilated(
            t.astype(jnp.float32), w, window_strides=(1, 1), padding="SAME",
            dimension_numbers=("NHWC", "HWIO", "NHWC"))
        y = jnp.maximum(y * p["scale"] + p["bias"], 0.0)
        return y.astype(jnp.bfloat16)

    def pool(t):
        nn, hh, ww, cc = t.shape
        t = t.reshape(nn, hh // 2, 2, ww // 2, 2, cc).astype(jnp.float32)
        return jnp.max(t, axis=(2, 4)).astype(jnp.bfloat16)

    x = conv(x, "1_1"); c12 = conv(x, "1_2"); x = pool(c12)
    x = conv(x, "2_1"); c22 = conv(x, "2_2"); x = pool(c22)
    x = conv(x, "3_1"); x = conv(x, "3_2"); c33 = conv(x, "3_3"); x = pool(c33)
    x = conv(x, "4_1"); x = conv(x, "4_2"); c43 = conv(x, "4_3"); x = pool(c43)
    x = conv(x, "5_1"); x = conv(x, "5_2"); c53 = conv(x, "5_3")
    to_nchw = lambda t: jnp.transpose(t.astype(jnp.float32), (0, 3, 1, 2))
    return (to_nchw(c12), to_nchw(c22), to_nchw(c33), to_nchw(c43),
            to_nchw(c53))


# ----------------------------------------------------------------------------
if __name__ == "__main__":
    key = jax.random.PRNGKey(0)
    key, kx, kp, kt = jax.random.split(key, 4)

    # Small input: batch=2, channels=3 (VGG expects RGB), spatial=16.
    x = jax.random.normal(kx, (2, 3, 16, 16), jnp.float32)
    params = init_params(kp)

    outs = vgg16_backbone_forward(x, params)
    outs = jax.block_until_ready(outs)

    expected = [(2, 64, 16, 16), (2, 128, 8, 8), (2, 256, 4, 4),
                (2, 512, 2, 2), (2, 512, 1, 1)]
    got = [tuple(o.shape) for o in outs]
    assert got == expected, got
    assert all(bool(jnp.all(jnp.isfinite(o))) for o in outs)

    refs = jax.block_until_ready(_ref_forward(x, params))
    for o, r in zip(outs, refs):
        err = float(jnp.max(jnp.abs(o - r)))
        assert bool(jnp.allclose(o, r, rtol=2e-2, atol=2e-2)), err

    # Extra self-check: multi-strip (halo) path + fused pool vs single strip.
    t = jax.random.normal(kt, (2, 16, 16, 64), jnp.float32).astype(jnp.bfloat16)
    y_a, p_a = conv_bn_relu(t, params["1_2"], pool=True)             # 1 strip
    y_b, p_b = conv_bn_relu(t, params["1_2"], pool=True, th_cap=8)   # 2 strips
    y_a, p_a, y_b, p_b = jax.block_until_ready((y_a, p_a, y_b, p_b))
    assert bool(jnp.allclose(y_a.astype(jnp.float32), y_b.astype(jnp.float32),
                             rtol=1e-2, atol=1e-2))
    assert bool(jnp.allclose(p_a.astype(jnp.float32), p_b.astype(jnp.float32),
                             rtol=1e-2, atol=1e-2))

    print("KERNEL_OK")
</pallas_src>

<mosaic_0001>
module attributes {stable_mosaic.version = 11 : i64} {
  func.func @_mm_bn_relu_kernel(%arg0: i32, %arg1: i32, %arg2: memref<1x16x16x27xbf16, #tpu.memory_space<vmem>>, %arg3: memref<27x64xbf16, #tpu.memory_space<vmem>>, %arg4: memref<1x64xf32, #tpu.memory_space<vmem>>, %arg5: memref<1x64xf32, #tpu.memory_space<vmem>>, %arg6: memref<1x16x16x64xbf16, #tpu.memory_space<vmem>>) attributes {dimension_semantics = [#tpu.dimension_semantics<parallel>, #tpu.dimension_semantics<parallel>], iteration_bounds = array<i64: 2, 1>, scalar_prefetch = 0 : i64, scratch_operands = 0 : i64, tpu.core_type = #tpu.core_type<tc>, window_params = [{transform_indices = @transform_0, window_bounds = array<i64: 1, 16, 16, 27>}, {pipeline_mode = #tpu.pipeline_mode<synchronous>, transform_indices = @transform_1, window_bounds = array<i64: 27, 64>}, {pipeline_mode = #tpu.pipeline_mode<synchronous>, transform_indices = @transform_2, window_bounds = array<i64: 1, 64>}, {pipeline_mode = #tpu.pipeline_mode<synchronous>, transform_indices = @transform_3, window_bounds = array<i64: 1, 64>}, {transform_indices = @transform_4, window_bounds = array<i64: 1, 16, 16, 64>}]} {
    %c0 = arith.constant 0 : index
    %c0_0 = arith.constant 0 : index
    %c0_1 = arith.constant 0 : index
    %c0_2 = arith.constant 0 : index
    %0 = vector.load %arg2[%c0, %c0_0, %c0_1, %c0_2] : memref<1x16x16x27xbf16, #tpu.memory_space<vmem>>, vector<1x16x16x27xbf16>
    %1 = vector.shape_cast %0 : vector<1x16x16x27xbf16> to vector<16x16x27xbf16>
    %2 = vector.shape_cast %1 : vector<16x16x27xbf16> to vector<256x27xbf16>
    %c0_3 = arith.constant 0 : index
    %c0_4 = arith.constant 0 : index
    %3 = vector.load %arg3[%c0_3, %c0_4] : memref<27x64xbf16, #tpu.memory_space<vmem>>, vector<27x64xbf16>
    %cst = arith.constant dense<0.000000e+00> : vector<256x64xf32>
    %4 = tpu.matmul %2, %3, %cst {dimension_numbers = #tpu.dot_dimension_numbers<[1], [0], [0], [1], [0, 0, 1, 1], [], []>} : vector<256x27xbf16>, vector<27x64xbf16>, vector<256x64xf32> -> vector<256x64xf32>
    %c0_5 = arith.constant 0 : index
    %c0_6 = arith.constant 0 : index
    %5 = vector.load %arg4[%c0_5, %c0_6] : memref<1x64xf32, #tpu.memory_space<vmem>>, vector<1x64xf32>
    %6 = vector.shape_cast %5 : vector<1x64xf32> to vector<64xf32>
    %7 = vector.shape_cast %6 : vector<64xf32> to vector<1x64xf32>
    %8 = vector.broadcast %7 : vector<1x64xf32> to vector<256x64xf32>
    %9 = arith.mulf %4, %8 : vector<256x64xf32>
    %c0_7 = arith.constant 0 : index
    %c0_8 = arith.constant 0 : index
    %10 = vector.load %arg5[%c0_7, %c0_8] : memref<1x64xf32, #tpu.memory_space<vmem>>, vector<1x64xf32>
    %11 = vector.shape_cast %10 : vector<1x64xf32> to vector<64xf32>
    %12 = vector.shape_cast %11 : vector<64xf32> to vector<1x64xf32>
    %13 = vector.broadcast %12 : vector<1x64xf32> to vector<256x64xf32>
    %14 = arith.addf %9, %13 : vector<256x64xf32>
    %cst_9 = arith.constant 0.000000e+00 : f32
    %15 = vector.broadcast %cst_9 : f32 to vector<256x64xf32>
    %16 = arith.maximumf %14, %15 : vector<256x64xf32>
    %17 = vector.shape_cast %16 : vector<256x64xf32> to vector<16x16x64xf32>
    %18 = arith.truncf %17 : vector<16x16x64xf32> to vector<16x16x64xbf16>
    %c0_10 = arith.constant 0 : index
    %c0_11 = arith.constant 0 : index
    %c0_12 = arith.constant 0 : index
    %c0_13 = arith.constant 0 : index
    %19 = vector.load %arg6[%c0_10, %c0_11, %c0_12, %c0_13] : memref<1x16x16x64xbf16, #tpu.memory_space<vmem>>, vector<1x16x16x64xbf16>
    %20 = vector.shape_cast %19 : vector<1x16x16x64xbf16> to vector<16x16x64xbf16>
    %21 = vector.shape_cast %18 : vector<16x16x64xbf16> to vector<1x16x16x64xbf16>
    tpu.vector_store %arg6[%c0_10, %c0_11, %c0_12, %c0_13], %21 {strides = array<i32>} : memref<1x16x16x64xbf16, #tpu.memory_space<vmem>>, vector<1x16x16x64xbf16>,
    return
  }
  func.func @transform_0(%arg0: i32, %arg1: i32) -> (i32, i32, i32, i32) {
    %c0_i32 = arith.constant 0 : i32
    %c0_i32_0 = arith.constant 0 : i32
    %c0_i32_1 = arith.constant 0 : i32
    return %arg0, %arg1, %c0_i32, %c0_i32_0 : i32, i32, i32, i32
  }
  func.func @transform_1(%arg0: i32, %arg1: i32) -> (i32, i32) {
    %c0_i32 = arith.constant 0 : i32
    %c0_i32_0 = arith.constant 0 : i32
    %c0_i32_1 = arith.constant 0 : i32
    return %c0_i32, %c0_i32_0 : i32, i32
  }
  func.func @transform_2(%arg0: i32, %arg1: i32) -> (i32, i32) {
    %c0_i32 = arith.constant 0 : i32
    %c0_i32_0 = arith.constant 0 : i32
    %c0_i32_1 = arith.constant 0 : i32
    return %c0_i32, %c0_i32_0 : i32, i32
  }
  func.func @transform_3(%arg0: i32, %arg1: i32) -> (i32, i32) {
    %c0_i32 = arith.constant 0 : i32
    %c0_i32_0 = arith.constant 0 : i32
    %c0_i32_1 = arith.constant 0 : i32
    return %c0_i32, %c0_i32_0 : i32, i32
  }
  func.func @transform_4(%arg0: i32, %arg1: i32) -> (i32, i32, i32, i32) {
    %c0_i32 = arith.constant 0 : i32
    %c0_i32_0 = arith.constant 0 : i32
    %c0_i32_1 = arith.constant 0 : i32
    return %arg0, %arg1, %c0_i32, %c0_i32_0 : i32, i32, i32, i32
  }
}

</mosaic_0001>

<llo_original>
// kernel: tpu_custom_call.1
$region0: #{tpu_custom_call.1}
  #allocation0 [shape = 'u32[]', space=smem, size = 0x4, offset = 0x4, fixed_abs, tag = 'smem constant byte address 0x4 - core index']
  #allocation1 [shape = 'u32[144,128]{1,0:T(1,128)}', space=vmem, size = 0x12000, scoped, tag = 'internal scratch']
  %s0 = inlined_call_operand.hbm [shape: bf16[2,16,16,27], index: 0, kind: input, shape index: {}]
  %s1 = inlined_call_operand.hbm [shape: bf16[27,64], index: 1, kind: input, shape index: {}]
  %s2 = inlined_call_operand.vmem [shape: f32[1,64], index: 2, kind: input, shape index: {}]
  %s3 = inlined_call_operand.vmem [shape: f32[1,64], index: 3, kind: input, shape index: {}]
  %s4 = inlined_call_operand.hbm [shape: bf16[2,16,16,64], index: 4, kind: output, shape index: {}]
  %s5 = sld [smem:[#allocation0]]
  $region57: #{tpu_custom_call.1} parent=0
    _
  %s7 = ssub.s32 1, %s5
  %s8 = scalar_select 0, %s7, %s5
  $region1: #{tpu_custom_call.1} parent=0
    #allocation2 [shape = 'u8[131072]{0}', space=vmem, size = 0x20000, scoped, tag = 'input window, operand 0']
    #allocation3 [shape = 's32[2]{0}', space=sflag, size = 0x8, scoped, tag = 'scoped memory for tpu_custom_call.1']
    #allocation4 [shape = 's32[2]{0}', space=sflag, size = 0x8, scoped, tag = 'scoped memory for tpu_custom_call.1']
    #allocation5 [shape = 'u8[8192]{0}', space=vmem, size = 0x2000, scoped, tag = 'input window, operand 1, single buffered']
    #allocation6 [shape = 's32[1]{0}', space=sflag, size = 0x4, scoped, tag = 'scoped memory for tpu_custom_call.1']
    #allocation7 [shape = 'u8[131072]{0}', space=vmem, size = 0x20000, scoped, tag = 'output window, operand 0']
    %9 = vsyncpa [#allocation3], 0
    %s10 = scalar_lea.sflag [#allocation3], 1
    %11 = vsyncpa %s10, 0
    %12 = vsyncpa [#allocation6], 0
    %13 = vsyncpa [#allocation4], 0
    %s14 = scalar_lea.sflag [#allocation4], 1
    %15 = vsyncpa %s14, 0
    loop: start=0, step=1, limit=4
    $region2: #{tpu_custom_call.1} parent=1 // loop_pre_header
      _
    $region3: #{tpu_custom_call.1} parent=1 // loop_header
      %s17 = sphi 0, %s21
      %p18 = scmp.ge.s32.totalorder %s17, 4
      %s24 = sphi 0, %s36
      %s25 = sphi 0, %s32
      %s26 = sphi 0, %s24
      %s27 = sphi 0, %s25
      %s28 = sphi 0, %s26
      %s29 = sphi 0, %s27
      %s41 = sphi 0, %s43
      %s44 = sphi 0, %s41
      %s45 = sphi 0, %s44
      %s61 = sphi 0, %s45
      %s65 = sphi 0, %s65
      %s67 = sphi 0, %s65
      %s68 = sphi 0, %s67
      %s82 = sphi 0, %s68
      %s86 = sphi 0, %s86
      %s88 = sphi 0, %s86
      %s89 = sphi 0, %s88
      %s103 = sphi 0, %s89
      %s107 = sphi 0, %s107
      %s109 = sphi 0, %s107
      %s110 = sphi 0, %s109
      %s124 = sphi 0, %s110
      %s132 = sphi 0, %s134
      %s135 = sphi 0, %s132
      %s136 = sphi 0, %s135
      %s152 = sphi 0, %s136
    $region4: #{tpu_custom_call.1} parent=1 // loop_header_branch
      %20 = sbr.rel (%p18) target = $region8
    $region5: #{tpu_custom_call.1} parent=1 // loop_body
      %s22 = ssub.s32 %s17, 1
      %s23 = ssub.s32 %s17, 2
      %s30 = sadd.s32 1, %s25
      %p31 = scmp.ge.s32.totalorder %s30, 1
      %s32 = scalar_select %p31, 0, %s30
      %s33 = sadd.s32 1, %s24
      %s34 = scalar_select %p31, %s33, %s24
      %p35 = scmp.ge.s32.totalorder %s34, 2
      %s36 = scalar_select %p35, 0, %s34
      %s37 = ssub.s32 %s24, %s36
      %s38 = ssub.s32 %s25, %s32
      %s39 = sor.u32 %s37, %s38
      %p40 = scmp.eq.s32.totalorder %s39, 0
      %s42 = sadd.s32 %s41, 1
      %s43 = scalar_select %p40, %s41, %s42
      %p46 = pneg %p40
      %p47 = scmp.eq.s32.totalorder %s17, 1
      %p48 = por %p46, %p47
      %p49 = scmp.ne.s32.totalorder %s41, %s44
      %p50 = scmp.eq.s32.totalorder %s17, 0
      %p51 = por %p49, %p50
      %p52 = scmp.ne.s32.totalorder %s41, %s44
      %p53 = scmp.eq.s32.totalorder %s22, 1
      %p54 = por %p52, %p53
      %p55 = scmp.ne.s32.totalorder %s44, %s45
      %p56 = scmp.eq.s32.totalorder %s22, 0
      %p57 = por %p55, %p56
      %p58 = scmp.ne.s32.totalorder %s44, %s45
      %p59 = scmp.eq.s32.totalorder %s23, 1
      %p60 = por %p58, %p59
      %p62 = scmp.ne.s32.totalorder %s45, %s61
      %p63 = scmp.eq.s32.totalorder %s23, 0
      %p64 = por %p62, %p63
      %s66 = sadd.s32 %s65, 1
      %p69 = scmp.eq.s32.totalorder %s17, 1
      %p70 = scmp.ne.s32.totalorder %s65, %s67
      %p71 = scmp.eq.s32.totalorder %s17, 0
      %p72 = por %p70, %p71
      %p73 = scmp.ne.s32.totalorder %s65, %s67
      %p74 = scmp.eq.s32.totalorder %s22, 1
      %p75 = por %p73, %p74
      %p76 = scmp.ne.s32.totalorder %s67, %s68
      %p77 = scmp.eq.s32.totalorder %s22, 0
      %p78 = por %p76, %p77
      %p79 = scmp.ne.s32.totalorder %s67, %s68
      %p80 = scmp.eq.s32.totalorder %s23, 1
      %p81 = por %p79, %p80
      %p83 = scmp.ne.s32.totalorder %s68, %s82
      %p84 = scmp.eq.s32.totalorder %s23, 0
      %p85 = por %p83, %p84
      %s87 = sadd.s32 %s86, 1
      %p90 = scmp.eq.s32.totalorder %s17, 1
      %p91 = scmp.ne.s32.totalorder %s86, %s88
      %p92 = scmp.eq.s32.totalorder %s17, 0
      %p93 = por %p91, %p92
      %p94 = scmp.ne.s32.totalorder %s86, %s88
      %p95 = scmp.eq.s32.totalorder %s22, 1
      %p96 = por %p94, %p95
      %p97 = scmp.ne.s32.totalorder %s88, %s89
      %p98 = scmp.eq.s32.totalorder %s22, 0
      %p99 = por %p97, %p98
      %p100 = scmp.ne.s32.totalorder %s88, %s89
      %p101 = scmp.eq.s32.totalorder %s23, 1
      %p102 = por %p100, %p101
      %p104 = scmp.ne.s32.totalorder %s89, %s103
      %p105 = scmp.eq.s32.totalorder %s23, 0
      %p106 = por %p104, %p105
      %s108 = sadd.s32 %s107, 1
      %p111 = scmp.eq.s32.totalorder %s17, 1
      %p112 = scmp.ne.s32.totalorder %s107, %s109
      %p113 = scmp.eq.s32.totalorder %s17, 0
      %p114 = por %p112, %p113
      %p115 = scmp.ne.s32.totalorder %s107, %s109
      %p116 = scmp.eq.s32.totalorder %s22, 1
      %p117 = por %p115, %p116
      %p118 = scmp.ne.s32.totalorder %s109, %s110
      %p119 = scmp.eq.s32.totalorder %s22, 0
      %p120 = por %p118, %p119
      %p121 = scmp.ne.s32.totalorder %s109, %s110
      %p122 = scmp.eq.s32.totalorder %s23, 1
      %p123 = por %p121, %p122
      %p125 = scmp.ne.s32.totalorder %s110, %s124
      %p126 = scmp.eq.s32.totalorder %s23, 0
      %p127 = por %p125, %p126
      %s128 = ssub.s32 %s24, %s36
      %s129 = ssub.s32 %s25, %s32
      %s130 = sor.u32 %s128, %s129
      %p131 = scmp.eq.s32.totalorder %s130, 0
      %s133 = sadd.s32 %s132, 1
      %s134 = scalar_select %p131, %s132, %s133
      %p137 = pneg %p131
      %p138 = scmp.eq.s32.totalorder %s17, 1
      %p139 = por %p137, %p138
      %p140 = scmp.ne.s32.totalorder %s132, %s135
      %p141 = scmp.eq.s32.totalorder %s17, 0
      %p142 = por %p140, %p141
      %p143 = scmp.ne.s32.totalorder %s132, %s135
      %p144 = scmp.eq.s32.totalorder %s22, 1
      %p145 = por %p143, %p144
      %p146 = scmp.ne.s32.totalorder %s135, %s136
      %p147 = scmp.eq.s32.totalorder %s22, 0
      %p148 = por %p146, %p147
      %p149 = scmp.ne.s32.totalorder %s135, %s136
      %p150 = scmp.eq.s32.totalorder %s23, 1
      %p151 = por %p149, %p150
      %p153 = scmp.ne.s32.totalorder %s136, %s152
      %p154 = scmp.eq.s32.totalorder %s23, 0
      %p155 = por %p153, %p154
      %p156 = scmp.le.s32.totalorder 1, %s17
      %p157 = scmp.lt.s32.totalorder %s17, 3
      %p158 = pnand %p156, %p157
      %p159 = pneg %p158
      // Predicated region
      $region9: #{tpu_custom_call.1} parent=5 // pred_check
        _
      $region10: #{tpu_custom_call.1} parent=5 // pred_check_branch
        %161 = sbr.rel (%p158) target = $region12
      $region11: #{tpu_custom_call.1} parent=5 // pred_region
        %s162 = ssub.s32 %s17, 1
        // Predicated region
        $region13: #{tpu_custom_call.1} parent=11 // pred_check
          %p163 = pneg %p78
        $region14: #{tpu_custom_call.1} parent=11 // pred_check_branch
          %165 = sbr.rel (%p163) target = $region16
        $region15: #{tpu_custom_call.1} parent=11 // pred_region
          %s167 = ssub.s32 256, 256
          %168 = vsyncadd [#allocation6], %s167
          %s169 = sshll.u32 [#allocation5], 4
          %s170 = int_to_ptr.vmem [resolvable:$true] %s169
          %175 = dma.hbm_to_vmem [thread:$0]  %s1, 256, %s170, [#allocation6], 64, 64, 4
        $region16: #{tpu_custom_call.1} parent=11 // pred_fallthru
          _
        // Predicated region
        $region17: #{tpu_custom_call.1} parent=11 // pred_check
          %p176 = pneg %p99
        $region18: #{tpu_custom_call.1} parent=11 // pred_check_branch
          %178 = sbr.rel (%p176) target = $region20
        $region19: #{tpu_custom_call.1} parent=11 // pred_region
          _
        $region20: #{tpu_custom_call.1} parent=11 // pred_fallthru
          _
        // Predicated region
        $region21: #{tpu_custom_call.1} parent=11 // pred_check
          %p179 = pneg %p120
        $region22: #{tpu_custom_call.1} parent=11 // pred_check_branch
          %181 = sbr.rel (%p179) target = $region24
        $region23: #{tpu_custom_call.1} parent=11 // pred_region
          _
        $region24: #{tpu_custom_call.1} parent=11 // pred_fallthru
          _
      $region12: #{tpu_custom_call.1} parent=5 // pred_fallthru
        _
      %p182 = scmp.lt.s32.totalorder %s17, 2
      // Predicated region
      $region25: #{tpu_custom_call.1} parent=5 // pred_check
        %p183 = pneg %p182
      $region26: #{tpu_custom_call.1} parent=5 // pred_check_branch
        %185 = sbr.rel (%p183) target = $region28
      $region27: #{tpu_custom_call.1} parent=5 // pred_region
        // Predicated region
        $region29: #{tpu_custom_call.1} parent=27 // pred_check
          %p186 = pneg %p51
        $region30: #{tpu_custom_call.1} parent=27 // pred_check_branch
          %188 = sbr.rel (%p186) target = $region32
        $region31: #{tpu_custom_call.1} parent=27 // pred_region
          %s189 = sand.u32 %s41, 1
          %s190 = scalar_lea.sflag [#allocation3], %s189
          %s191 = sand.u32 %s41, 1
          %s192 = smul.addr %s191, 128
          %s193 = scalar_lea.vmem [#allocation2], %s192
          %s194 = smul.u32 16, %s25
          %s196 = ssub.s32 2048, 2048
          %197 = vsyncadd %s190, %s196
          %s198 = smul.addr %s194, 2
          %s199 = smul.addr %s24, 32
          %s200 = sadd.s32 %s198, %s199
          %s201 = smul.addr %s200, 64
          %s202 = scalar_lea.hbm %s0, %s201
          %s203 = sshll.u32 %s193, 4
          %s204 = int_to_ptr.vmem [resolvable:$true] %s203
          %209 = dma.hbm_to_vmem [thread:$0]  %s202, 2048, %s204, %s190, 64, 64, 4
        $region32: #{tpu_custom_call.1} parent=27 // pred_fallthru
          _
      $region28: #{tpu_custom_call.1} parent=5 // pred_fallthru
        _
      %p210 = scmp.le.s32.totalorder 1, %s17
      %p211 = scmp.lt.s32.totalorder %s17, 3
      %p212 = pnand %p210, %p211
      %p213 = pneg %p212
      // Predicated region
      $region33: #{tpu_custom_call.1} parent=5 // pred_check
        _
      $region34: #{tpu_custom_call.1} parent=5 // pred_check_branch
        %215 = sbr.rel (%p212) target = $region36
      $region35: #{tpu_custom_call.1} parent=5 // pred_region
        %s216 = ssub.s32 %s17, 1
        %s217 = sand.u32 %s44, 1
        %s218 = scalar_lea.sflag [#allocation3], %s217
        %s219 = sand.u32 %s44, 1
        %s220 = smul.addr %s219, 128
        %s221 = scalar_lea.vmem [#allocation2], %s220
        // Predicated region
        $region37: #{tpu_custom_call.1} parent=35 // pred_check
          %p222 = pneg %p57
        $region38: #{tpu_custom_call.1} parent=35 // pred_check_branch
          %224 = sbr.rel (%p222) target = $region40
        $region39: #{tpu_custom_call.1} parent=35 // pred_region
          %225 = dma.done %s218, 2048
        $region40: #{tpu_custom_call.1} parent=35 // pred_fallthru
          _
        // Predicated region
        $region41: #{tpu_custom_call.1} parent=35 // pred_check
          %p226 = pneg %p78
        $region42: #{tpu_custom_call.1} parent=35 // pred_check_branch
          %228 = sbr.rel (%p226) target = $region44
        $region43: #{tpu_custom_call.1} parent=35 // pred_region
          %229 = dma.done [#allocation6], 256
        $region44: #{tpu_custom_call.1} parent=35 // pred_fallthru
          _
        %s230 = sand.u32 %s44, 1
        %s231 = scalar_lea.sflag [#allocation3], %s230
        %s232 = sand.u32 %s44, 1
        %s233 = smul.addr %s232, 128
        %s234 = scalar_lea.vmem [#allocation2], %s233
        %p235 = pneg %p57
        %p236 = pneg %p54
        %p237 = pneg %p78
        %p238 = pneg %p75
        %p239 = pneg %p99
        %p240 = pneg %p96
        %p241 = pneg %p120
        %p242 = pneg %p117
        %p243 = pneg %p148
        %p244 = pneg %p145
        %s245 = sand.u32 %s135, 1
        %s246 = scalar_lea.sflag [#allocation4], %s245
        %s247 = sand.u32 %s135, 1
        %s248 = smul.addr %s247, 128
        %s249 = scalar_lea.vmem [#allocation7], %s248
        %s250 = smul.u32 16, %s27
        %s251 = smul.u32 16, %s27
        %v253 = vld [vmem:[%s221] sm:$0xf]
        %v254 = vld [vmem:[%s221 + $0x4] sm:$0xf]
        %v255 = vld [vmem:[%s221 + $0x8] sm:$0xf]
        %v256 = vld [vmem:[%s221 + $0xc] sm:$0xf]
        %v257 = vld [vmem:[%s221 + $0x10] sm:$0xf]
        %v258 = vld [vmem:[%s221 + $0x14] sm:$0xf]
        %v259 = vld [vmem:[%s221 + $0x18] sm:$0xf]
        %v260 = vld [vmem:[%s221 + $0x1c] sm:$0xf]
        %v261 = vld [vmem:[%s221 + $0x20] sm:$0xf]
        %v262 = vld [vmem:[%s221 + $0x24] sm:$0xf]
        %v263 = vld [vmem:[%s221 + $0x28] sm:$0xf]
        %v264 = vld [vmem:[%s221 + $0x2c] sm:$0xf]
        %v265 = vld [vmem:[%s221 + $0x30] sm:$0xf]
        %v266 = vld [vmem:[%s221 + $0x34] sm:$0xf]
        %v267 = vld [vmem:[%s221 + $0x38] sm:$0xf]
        %v268 = vld [vmem:[%s221 + $0x3c] sm:$0xf]
        %v269 = vld [vmem:[%s221 + $0x40] sm:$0xf]
        %v270 = vld [vmem:[%s221 + $0x44] sm:$0xf]
        %v271 = vld [vmem:[%s221 + $0x48] sm:$0xf]
        %v272 = vld [vmem:[%s221 + $0x4c] sm:$0xf]
        %v273 = vld [vmem:[%s221 + $0x50] sm:$0xf]
        %v274 = vld [vmem:[%s221 + $0x54] sm:$0xf]
        %v275 = vld [vmem:[%s221 + $0x58] sm:$0xf]
        %v276 = vld [vmem:[%s221 + $0x5c] sm:$0xf]
        %v277 = vld [vmem:[%s221 + $0x60] sm:$0xf]
        %v278 = vld [vmem:[%s221 + $0x64] sm:$0xf]
        %v279 = vld [vmem:[%s221 + $0x68] sm:$0xf]
        %v280 = vld [vmem:[%s221 + $0x6c] sm:$0xf]
        %v281 = vld [vmem:[%s221 + $0x70] sm:$0xf]
        %v282 = vld [vmem:[%s221 + $0x74] sm:$0xf]
        %v283 = vld [vmem:[%s221 + $0x78] sm:$0xf]
        %v284 = vld [vmem:[%s221 + $0x7c] sm:$0xf]
        %v285 = vld [vmem:[#allocation5] sm:$0xf]
        %v286 = vld [vmem:[#allocation5 + $0x4] sm:$0xf]
        %v287 = vld [vmem:[#allocation5 + $0x8] sm:$0xf]
        %v288 = vld [vmem:[#allocation5 + $0xc] sm:$0x3]
        %v321 = vunpack.c.l.b16 %v253
        %v322 = vunpack.c.l.b16 %v254
        %v323 = vunpack.c.l.b16 %v255
        %v324 = vunpack.c.l.b16 %v256
        %v325 = vunpack.c.l.b16 %v257
        %v326 = vunpack.c.l.b16 %v258
        %v327 = vunpack.c.l.b16 %v259
        %v328 = vunpack.c.l.b16 %v260
        %v329 = vunpack.c.l.b16 %v261
        %v330 = vunpack.c.l.b16 %v262
        %v331 = vunpack.c.l.b16 %v263
        %v332 = vunpack.c.l.b16 %v264
        %v333 = vunpack.c.l.b16 %v265
        %v334 = vunpack.c.l.b16 %v266
        %v335 = vunpack.c.l.b16 %v267
        %v336 = vunpack.c.l.b16 %v268
        %v337 = vunpack.c.l.b16 %v269
        %v338 = vunpack.c.l.b16 %v270
        %v339 = vunpack.c.l.b16 %v271
        %v340 = vunpack.c.l.b16 %v272
        %v341 = vunpack.c.l.b16 %v273
        %v342 = vunpack.c.l.b16 %v274
        %v343 = vunpack.c.l.b16 %v275
        %v344 = vunpack.c.l.b16 %v276
        %v345 = vunpack.c.l.b16 %v277
        %v346 = vunpack.c.l.b16 %v278
        %v347 = vunpack.c.l.b16 %v279
        %v348 = vunpack.c.l.b16 %v280
        %v349 = vunpack.c.l.b16 %v281
        %v350 = vunpack.c.l.b16 %v282
        %v351 = vunpack.c.l.b16 %v283
        %v352 = vunpack.c.l.b16 %v284
        %v353 = vpack.c.b16 %v322, %v321
        %v354 = vpack.c.b16 %v324, %v323
        %v355 = vpack.c.b16 %v326, %v325
        %v356 = vpack.c.b16 %v328, %v327
        %v357 = vpack.c.b16 %v330, %v329
        %v358 = vpack.c.b16 %v332, %v331
        %v359 = vpack.c.b16 %v334, %v333
        %v360 = vpack.c.b16 %v336, %v335
        %v361 = vpack.c.b16 %v338, %v337
        %v362 = vpack.c.b16 %v340, %v339
        %v363 = vpack.c.b16 %v342, %v341
        %v364 = vpack.c.b16 %v344, %v343
        %v365 = vpack.c.b16 %v346, %v345
        %v366 = vpack.c.b16 %v348, %v347
        %v367 = vpack.c.b16 %v350, %v349
        %v368 = vpack.c.b16 %v352, %v351
        %v373 = vunpack.c.l.b16 %v285
        %v374 = vunpack.c.l.b16 %v286
        %v375 = vunpack.c.l.b16 %v287
        %v376 = vunpack.c.l.b16 %v288
        %v377 = vpack.c.b16 %v374, %v373
        %v378 = vpack.c.b16 %v376, %v375
        %vm380 = vcmask 220160
        %v382 = vsel %vm380, %v353, 0
        %v385 = vsel %vm380, %v354, 0
        %v388 = vsel %vm380, %v355, 0
        %v391 = vsel %vm380, %v356, 0
        %v394 = vsel %vm380, %v357, 0
        %v397 = vsel %vm380, %v358, 0
        %v400 = vsel %vm380, %v359, 0
        %v403 = vsel %vm380, %v360, 0
        %v406 = vsel %vm380, %v361, 0
        %v409 = vsel %vm380, %v362, 0
        %v412 = vsel %vm380, %v363, 0
        %v415 = vsel %vm380, %v364, 0
        %v418 = vsel %vm380, %v365, 0
        %v421 = vsel %vm380, %v366, 0
        %v424 = vsel %vm380, %v367, 0
        %v427 = vsel %vm380, %v368, 0
        %vm429 = vcmask 1044480
        %vm430 = vcmask 1045504
        %v431 = vsel %vm429, 4294967295, 65535
        %v432 = vsel %vm430, %v431, 0
        %v434 = vand.u32 %v378, %v432
        %436 = vmatprep.subr.bf16.mxu0 0
        %437 = vmatpush1.bf16.msra.mxu0 %v377
        %438 = vmatprep.subr.bf16.mxu0 0
        %439 = vmatpush1.bf16.msra.mxu0 %v434
        %440 = vmatprep.subr.bf16.mxu0 0
        %441 = vmatpush1.bf16.msra.mxu0 0
        %442 = vmatprep.subr.bf16.mxu0 0
        %443 = vmatpush1.bf16.msra.mxu0 0
        %444 = vmatprep.subr.bf16.mxu0 0
        %445 = vmatpush1.bf16.msra.mxu0 0
        %446 = vmatprep.subr.bf16.mxu0 0
        %447 = vmatpush1.bf16.msra.mxu0 0
        %448 = vmatprep.subr.bf16.mxu0 0
        %449 = vmatpush1.bf16.msra.mxu0 0
        %450 = vmatprep.subr.bf16.mxu0 0
        %451 = vmatpush1.bf16.msra.mxu0 0
        %452 = vmatprep.subr.bf16.mxu0 0
        %453 = vmatpush1.bf16.msra.mxu0 0
        %454 = vmatprep.subr.bf16.mxu0 0
        %455 = vmatpush1.bf16.msra.mxu0 0
        %456 = vmatprep.subr.bf16.mxu0 0
        %457 = vmatpush1.bf16.msra.mxu0 0
        %458 = vmatprep.subr.bf16.mxu0 0
        %459 = vmatpush1.bf16.msra.mxu0 0
        %460 = vmatprep.subr.bf16.mxu0 0
        %461 = vmatpush1.bf16.msra.mxu0 0
        %462 = vmatprep.subr.bf16.mxu0 0
        %463 = vmatpush1.bf16.msra.mxu0 0
        %464 = vmatprep.subr.bf16.mxu0 0
        %465 = vmatpush1.bf16.msra.mxu0 0
        %466 = vmatprep.subr.bf16.mxu0 0
        %467 = vmatpush1.bf16.msra.mxu0 0
        %468 = vmatprep.mubr.bf16.mxu0 0
        %469 = vmatmul.mubr.bf16.gmra.mrb[0].mxu0 %v382
        %v470 = vpop.f32.mrb[0].mxu0
        %v471 = vadd.f32 0.0, %v470
        %v472 = vpop.f32.mrb[0].mxu0
        %v473 = vpop.f32.mrb[0].mxu0
        %v474 = vadd.f32 0.0, %v473
        %v475 = vpop.f32.mrb[0].mxu0
        %476 = vmatprep.mubr.bf16.mxu0 0
        %477 = vmatmul.mubr.bf16.gmra.mrb[0].mxu0 %v385
        %v478 = vpop.f32.mrb[0].mxu0
        %v479 = vadd.f32 0.0, %v478
        %v480 = vpop.f32.mrb[0].mxu0
        %v481 = vpop.f32.mrb[0].mxu0
        %v482 = vadd.f32 0.0, %v481
        %v483 = vpop.f32.mrb[0].mxu0
        %484 = vmatprep.mubr.bf16.mxu0 0
        %485 = vmatmul.mubr.bf16.gmra.mrb[0].mxu0 %v388
        %v486 = vpop.f32.mrb[0].mxu0
        %v487 = vadd.f32 0.0, %v486
        %v488 = vpop.f32.mrb[0].mxu0
        %v489 = vpop.f32.mrb[0].mxu0
        %v490 = vadd.f32 0.0, %v489
        %v491 = vpop.f32.mrb[0].mxu0
        %492 = vmatprep.mubr.bf16.mxu0 0
        %493 = vmatmul.mubr.bf16.gmra.mrb[0].mxu0 %v391
        %v494 = vpop.f32.mrb[0].mxu0
        %v495 = vadd.f32 0.0, %v494
        %v496 = vpop.f32.mrb[0].mxu0
        %v497 = vpop.f32.mrb[0].mxu0
        %v498 = vadd.f32 0.0, %v497
        %v499 = vpop.f32.mrb[0].mxu0
        %500 = vmatprep.mubr.bf16.mxu0 0
        %501 = vmatmul.mubr.bf16.gmra.mrb[0].mxu0 %v394
        %v502 = vpop.f32.mrb[0].mxu0
        %v503 = vadd.f32 0.0, %v502
        %v504 = vpop.f32.mrb[0].mxu0
        %v505 = vpop.f32.mrb[0].mxu0
        %v506 = vadd.f32 0.0, %v505
        %v507 = vpop.f32.mrb[0].mxu0
        %508 = vmatprep.mubr.bf16.mxu0 0
        %509 = vmatmul.mubr.bf16.gmra.mrb[0].mxu0 %v397
        %v510 = vpop.f32.mrb[0].mxu0
        %v511 = vadd.f32 0.0, %v510
        %v512 = vpop.f32.mrb[0].mxu0
        %v513 = vpop.f32.mrb[0].mxu0
        %v514 = vadd.f32 0.0, %v513
        %v515 = vpop.f32.mrb[0].mxu0
        %516 = vmatprep.mubr.bf16.mxu0 0
        %517 = vmatmul.mubr.bf16.gmra.mrb[0].mxu0 %v400
        %v518 = vpop.f32.mrb[0].mxu0
        %v519 = vadd.f32 0.0, %v518
        %v520 = vpop.f32.mrb[0].mxu0
        %v521 = vpop.f32.mrb[0].mxu0
        %v522 = vadd.f32 0.0, %v521
        %v523 = vpop.f32.mrb[0].mxu0
        %524 = vmatprep.mubr.bf16.mxu0 0
        %525 = vmatmul.mubr.bf16.gmra.mrb[0].mxu0 %v403
        %v526 = vpop.f32.mrb[0].mxu0
        %v527 = vadd.f32 0.0, %v526
        %v528 = vpop.f32.mrb[0].mxu0
        %v529 = vpop.f32.mrb[0].mxu0
        %v530 = vadd.f32 0.0, %v529
        %v531 = vpop.f32.mrb[0].mxu0
        %532 = vmatprep.mubr.bf16.mxu0 0
        %533 = vmatmul.mubr.bf16.gmra.mrb[0].mxu0 %v406
        %v534 = vpop.f32.mrb[0].mxu0
        %v535 = vadd.f32 0.0, %v534
        %v536 = vpop.f32.mrb[0].mxu0
        %v537 = vpop.f32.mrb[0].mxu0
        %v538 = vadd.f32 0.0, %v537
        %v539 = vpop.f32.mrb[0].mxu0
        %540 = vmatprep.mubr.bf16.mxu0 0
        %541 = vmatmul.mubr.bf16.gmra.mrb[0].mxu0 %v409
        %v542 = vpop.f32.mrb[0].mxu0
        %v543 = vadd.f32 0.0, %v542
        %v544 = vpop.f32.mrb[0].mxu0
        %v545 = vpop.f32.mrb[0].mxu0
        %v546 = vadd.f32 0.0, %v545
        %v547 = vpop.f32.mrb[0].mxu0
        %548 = vmatprep.mubr.bf16.mxu0 0
        %549 = vmatmul.mubr.bf16.gmra.mrb[0].mxu0 %v412
        %v550 = vpop.f32.mrb[0].mxu0
        %v551 = vadd.f32 0.0, %v550
        %v552 = vpop.f32.mrb[0].mxu0
        %v553 = vpop.f32.mrb[0].mxu0
        %v554 = vadd.f32 0.0, %v553
        %v555 = vpop.f32.mrb[0].mxu0
        %556 = vmatprep.mubr.bf16.mxu0 0
        %557 = vmatmul.mubr.bf16.gmra.mrb[0].mxu0 %v415
        %v558 = vpop.f32.mrb[0].mxu0
        %v559 = vadd.f32 0.0, %v558
        %v560 = vpop.f32.mrb[0].mxu0
        %v561 = vpop.f32.mrb[0].mxu0
        %v562 = vadd.f32 0.0, %v561
        %v563 = vpop.f32.mrb[0].mxu0
        %564 = vmatprep.mubr.bf16.mxu0 0
        %565 = vmatmul.mubr.bf16.gmra.mrb[0].mxu0 %v418
        %v566 = vpop.f32.mrb[0].mxu0
        %v567 = vadd.f32 0.0, %v566
        %v568 = vpop.f32.mrb[0].mxu0
        %v569 = vpop.f32.mrb[0].mxu0
        %v570 = vadd.f32 0.0, %v569
        %v571 = vpop.f32.mrb[0].mxu0
        %572 = vmatprep.mubr.bf16.mxu0 0
        %573 = vmatmul.mubr.bf16.gmra.mrb[0].mxu0 %v421
        %v574 = vpop.f32.mrb[0].mxu0
        %v575 = vadd.f32 0.0, %v574
        %v576 = vpop.f32.mrb[0].mxu0
        %v577 = vpop.f32.mrb[0].mxu0
        %v578 = vadd.f32 0.0, %v577
        %v579 = vpop.f32.mrb[0].mxu0
        %580 = vmatprep.mubr.bf16.mxu0 0
        %581 = vmatmul.mubr.bf16.gmra.mrb[0].mxu0 %v424
        %v582 = vpop.f32.mrb[0].mxu0
        %v583 = vadd.f32 0.0, %v582
        %v584 = vpop.f32.mrb[0].mxu0
        %v585 = vpop.f32.mrb[0].mxu0
        %v586 = vadd.f32 0.0, %v585
        %v587 = vpop.f32.mrb[0].mxu0
        %588 = vmatprep.mubr.bf16.mxu0 0
        %589 = vmatmul.mubr.bf16.gmra.mrb[0].mxu0 %v427
        %v590 = vpop.f32.mrb[0].mxu0
        %v591 = vadd.f32 0.0, %v590
        %v592 = vpop.f32.mrb[0].mxu0
        %v593 = vpop.f32.mrb[0].mxu0
        %v594 = vadd.f32 0.0, %v593
        %v595 = vpop.f32.mrb[0].mxu0
        %596 = vdwg.mxu0
        %v597 = vld [vmem:[%s2] sm:$0x1]
        %v599 = vlaneseq
        %v600 = vshrl.u32 %v599, 7
        %v601 = vsub.s32 0, %v600
        %v602 = vrot.slane %v597, %v601
        %v604 = vmul.f32 %v471, %v602
        %v605 = vmul.f32 %v474, %v602
        %v606 = vmul.f32 %v479, %v602
        %v607 = vmul.f32 %v482, %v602
        %v608 = vmul.f32 %v487, %v602
        %v609 = vmul.f32 %v490, %v602
        %v610 = vmul.f32 %v495, %v602
        %v611 = vmul.f32 %v498, %v602
        %v612 = vmul.f32 %v503, %v602
        %v613 = vmul.f32 %v506, %v602
        %v614 = vmul.f32 %v511, %v602
        %v615 = vmul.f32 %v514, %v602
        %v616 = vmul.f32 %v519, %v602
        %v617 = vmul.f32 %v522, %v602
        %v618 = vmul.f32 %v527, %v602
        %v619 = vmul.f32 %v530, %v602
        %v620 = vmul.f32 %v535, %v602
        %v621 = vmul.f32 %v538, %v602
        %v622 = vmul.f32 %v543, %v602
        %v623 = vmul.f32 %v546, %v602
        %v624 = vmul.f32 %v551, %v602
        %v625 = vmul.f32 %v554, %v602
        %v626 = vmul.f32 %v559, %v602
        %v627 = vmul.f32 %v562, %v602
        %v628 = vmul.f32 %v567, %v602
        %v629 = vmul.f32 %v570, %v602
        %v630 = vmul.f32 %v575, %v602
        %v631 = vmul.f32 %v578, %v602
        %v632 = vmul.f32 %v583, %v602
        %v633 = vmul.f32 %v586, %v602
        %v634 = vmul.f32 %v591, %v602
        %v635 = vmul.f32 %v594, %v602
        %v636 = vld [vmem:[%s3] sm:$0x1]
        %v638 = vlaneseq
        %v639 = vshrl.u32 %v638, 7
        %v640 = vsub.s32 0, %v639
        %v641 = vrot.slane %v636, %v640
        %v643 = vadd.f32 %v604, %v641
        %v644 = vadd.f32 %v605, %v641
        %v645 = vadd.f32 %v606, %v641
        %v646 = vadd.f32 %v607, %v641
        %v647 = vadd.f32 %v608, %v641
        %v648 = vadd.f32 %v609, %v641
        %v649 = vadd.f32 %v610, %v641
        %v650 = vadd.f32 %v611, %v641
        %v651 = vadd.f32 %v612, %v641
        %v652 = vadd.f32 %v613, %v641
        %v653 = vadd.f32 %v614, %v641
        %v654 = vadd.f32 %v615, %v641
        %v655 = vadd.f32 %v616, %v641
        %v656 = vadd.f32 %v617, %v641
        %v657 = vadd.f32 %v618, %v641
        %v658 = vadd.f32 %v619, %v641
        %v659 = vadd.f32 %v620, %v641
        %v660 = vadd.f32 %v621, %v641
        %v661 = vadd.f32 %v622, %v641
        %v662 = vadd.f32 %v623, %v641
        %v663 = vadd.f32 %v624, %v641
        %v664 = vadd.f32 %v625, %v641
        %v665 = vadd.f32 %v626, %v641
        %v666 = vadd.f32 %v627, %v641
        %v667 = vadd.f32 %v628, %v641
        %v668 = vadd.f32 %v629, %v641
        %v669 = vadd.f32 %v630, %v641
        %v670 = vadd.f32 %v631, %v641
        %v671 = vadd.f32 %v632, %v641
        %v672 = vadd.f32 %v633, %v641
        %v673 = vadd.f32 %v634, %v641
        %v674 = vadd.f32 %v635, %v641
        %v675 = vmax.f32 %v643, 0.0
        %v676 = vmax.f32 %v644, 0.0
        %v677 = vmax.f32 %v645, 0.0
        %v678 = vmax.f32 %v646, 0.0
        %v679 = vmax.f32 %v647, 0.0
        %v680 = vmax.f32 %v648, 0.0
        %v681 = vmax.f32 %v649, 0.0
        %v682 = vmax.f32 %v650, 0.0
        %v683 = vmax.f32 %v651, 0.0
        %v684 = vmax.f32 %v652, 0.0
        %v685 = vmax.f32 %v653, 0.0
        %v686 = vmax.f32 %v654, 0.0
        %v687 = vmax.f32 %v655, 0.0
        %v688 = vmax.f32 %v656, 0.0
        %v689 = vmax.f32 %v657, 0.0
        %v690 = vmax.f32 %v658, 0.0
        %v691 = vmax.f32 %v659, 0.0
        %v692 = vmax.f32 %v660, 0.0
        %v693 = vmax.f32 %v661, 0.0
        %v694 = vmax.f32 %v662, 0.0
        %v695 = vmax.f32 %v663, 0.0
        %v696 = vmax.f32 %v664, 0.0
        %v697 = vmax.f32 %v665, 0.0
        %v698 = vmax.f32 %v666, 0.0
        %v699 = vmax.f32 %v667, 0.0
        %v700 = vmax.f32 %v668, 0.0
        %v701 = vmax.f32 %v669, 0.0
        %v702 = vmax.f32 %v670, 0.0
        %v703 = vmax.f32 %v671, 0.0
        %v704 = vmax.f32 %v672, 0.0
        %v705 = vmax.f32 %v673, 0.0
        %v706 = vmax.f32 %v674, 0.0
        %v707 = vpack.c.bf16 %v676, %v675
        %v708 = vpack.c.bf16 %v678, %v677
        %v709 = vpack.c.bf16 %v680, %v679
        %v710 = vpack.c.bf16 %v682, %v681
        %v711 = vpack.c.bf16 %v684, %v683
        %v712 = vpack.c.bf16 %v686, %v685
        %v713 = vpack.c.bf16 %v688, %v687
        %v714 = vpack.c.bf16 %v690, %v689
        %v715 = vpack.c.bf16 %v692, %v691
        %v716 = vpack.c.bf16 %v694, %v693
        %v717 = vpack.c.bf16 %v696, %v695
        %v718 = vpack.c.bf16 %v698, %v697
        %v719 = vpack.c.bf16 %v700, %v699
        %v720 = vpack.c.bf16 %v702, %v701
        %v721 = vpack.c.bf16 %v704, %v703
        %v722 = vpack.c.bf16 %v706, %v705
        %v739 = vunpack.c.l.b16 %v707
        %v740 = vunpack.c.h.b16 %v707
        %v741 = vunpack.c.l.b16 %v708
        %v742 = vunpack.c.h.b16 %v708
        %v743 = vunpack.c.l.b16 %v709
        %v744 = vunpack.c.h.b16 %v709
        %v745 = vunpack.c.l.b16 %v710
        %v746 = vunpack.c.h.b16 %v710
        %v747 = vunpack.c.l.b16 %v711
        %v748 = vunpack.c.h.b16 %v711
        %v749 = vunpack.c.l.b16 %v712
        %v750 = vunpack.c.h.b16 %v712
        %v751 = vunpack.c.l.b16 %v713
        %v752 = vunpack.c.h.b16 %v713
        %v753 = vunpack.c.l.b16 %v714
        %v754 = vunpack.c.h.b16 %v714
        %v755 = vunpack.c.l.b16 %v715
        %v756 = vunpack.c.h.b16 %v715
        %v757 = vunpack.c.l.b16 %v716
        %v758 = vunpack.c.h.b16 %v716
        %v759 = vunpack.c.l.b16 %v717
        %v760 = vunpack.c.h.b16 %v717
        %v761 = vunpack.c.l.b16 %v718
        %v762 = vunpack.c.h.b16 %v718
        %v763 = vunpack.c.l.b16 %v719
        %v764 = vunpack.c.h.b16 %v719
        %v765 = vunpack.c.l.b16 %v720
        %v766 = vunpack.c.h.b16 %v720
        %v767 = vunpack.c.l.b16 %v721
        %v768 = vunpack.c.h.b16 %v721
        %v769 = vunpack.c.l.b16 %v722
        %v770 = vunpack.c.h.b16 %v722
        %v771 = vpack.c.b16 %v739, %v739
        %v772 = vpack.c.b16 %v740, %v740
        %v773 = vpack.c.b16 %v741, %v741
        %v774 = vpack.c.b16 %v742, %v742
        %v775 = vpack.c.b16 %v743, %v743
        %v776 = vpack.c.b16 %v744, %v744
        %v777 = vpack.c.b16 %v745, %v745
        %v778 = vpack.c.b16 %v746, %v746
        %v779 = vpack.c.b16 %v747, %v747
        %v780 = vpack.c.b16 %v748, %v748
        %v781 = vpack.c.b16 %v749, %v749
        %v782 = vpack.c.b16 %v750, %v750
        %v783 = vpack.c.b16 %v751, %v751
        %v784 = vpack.c.b16 %v752, %v752
        %v785 = vpack.c.b16 %v753, %v753
        %v786 = vpack.c.b16 %v754, %v754
        %v787 = vpack.c.b16 %v755, %v755
        %v788 = vpack.c.b16 %v756, %v756
        %v789 = vpack.c.b16 %v757, %v757
        %v790 = vpack.c.b16 %v758, %v758
        %v791 = vpack.c.b16 %v759, %v759
        %v792 = vpack.c.b16 %v760, %v760
        %v793 = vpack.c.b16 %v761, %v761
        %v794 = vpack.c.b16 %v762, %v762
        %v795 = vpack.c.b16 %v763, %v763
        %v796 = vpack.c.b16 %v764, %v764
        %v797 = vpack.c.b16 %v765, %v765
        %v798 = vpack.c.b16 %v766, %v766
        %v799 = vpack.c.b16 %v767, %v767
        %v800 = vpack.c.b16 %v768, %v768
        %v801 = vpack.c.b16 %v769, %v769
        %v802 = vpack.c.b16 %v770, %v770
        %vm835 = vcmask 519168
        %836 = vst.msk [vmem:[%s249] sm:$0xf] %vm835, %v771
        %837 = vst.msk [vmem:[%s249 + $0x4] sm:$0xf] %vm835, %v772
        %838 = vst.msk [vmem:[%s249 + $0x8] sm:$0xf] %vm835, %v773
        %839 = vst.msk [vmem:[%s249 + $0xc] sm:$0xf] %vm835, %v774
        %840 = vst.msk [vmem:[%s249 + $0x10] sm:$0xf] %vm835, %v775
        %841 = vst.msk [vmem:[%s249 + $0x14] sm:$0xf] %vm835, %v776
        %842 = vst.msk [vmem:[%s249 + $0x18] sm:$0xf] %vm835, %v777
        %843 = vst.msk [vmem:[%s249 + $0x1c] sm:$0xf] %vm835, %v778
        %844 = vst.msk [vmem:[%s249 + $0x20] sm:$0xf] %vm835, %v779
        %845 = vst.msk [vmem:[%s249 + $0x24] sm:$0xf] %vm835, %v780
        %846 = vst.msk [vmem:[%s249 + $0x28] sm:$0xf] %vm835, %v781
        %847 = vst.msk [vmem:[%s249 + $0x2c] sm:$0xf] %vm835, %v782
        %848 = vst.msk [vmem:[%s249 + $0x30] sm:$0xf] %vm835, %v783
        %849 = vst.msk [vmem:[%s249 + $0x34] sm:$0xf] %vm835, %v784
        %850 = vst.msk [vmem:[%s249 + $0x38] sm:$0xf] %vm835, %v785
        %851 = vst.msk [vmem:[%s249 + $0x3c] sm:$0xf] %vm835, %v786
        %852 = vst.msk [vmem:[%s249 + $0x40] sm:$0xf] %vm835, %v787
        %853 = vst.msk [vmem:[%s249 + $0x44] sm:$0xf] %vm835, %v788
        %854 = vst.msk [vmem:[%s249 + $0x48] sm:$0xf] %vm835, %v789
        %855 = vst.msk [vmem:[%s249 + $0x4c] sm:$0xf] %vm835, %v790
        %856 = vst.msk [vmem:[%s249 + $0x50] sm:$0xf] %vm835, %v791
        %857 = vst.msk [vmem:[%s249 + $0x54] sm:$0xf] %vm835, %v792
        %858 = vst.msk [vmem:[%s249 + $0x58] sm:$0xf] %vm835, %v793
        %859 = vst.msk [vmem:[%s249 + $0x5c] sm:$0xf] %vm835, %v794
        %860 = vst.msk [vmem:[%s249 + $0x60] sm:$0xf] %vm835, %v795
        %861 = vst.msk [vmem:[%s249 + $0x64] sm:$0xf] %vm835, %v796
        %862 = vst.msk [vmem:[%s249 + $0x68] sm:$0xf] %vm835, %v797
        %863 = vst.msk [vmem:[%s249 + $0x6c] sm:$0xf] %vm835, %v798
        %864 = vst.msk [vmem:[%s249 + $0x70] sm:$0xf] %vm835, %v799
        %865 = vst.msk [vmem:[%s249 + $0x74] sm:$0xf] %vm835, %v800
        %866 = vst.msk [vmem:[%s249 + $0x78] sm:$0xf] %vm835, %v801
        %867 = vst.msk [vmem:[%s249 + $0x7c] sm:$0xf] %vm835, %v802
        %s868 = sand.u32 %s135, 1
        %s869 = scalar_lea.sflag [#allocation4], %s868
        %s870 = sand.u32 %s135, 1
        %s871 = smul.addr %s870, 128
        %s872 = scalar_lea.vmem [#allocation7], %s871
        // Predicated region
        $region45: #{tpu_custom_call.1} parent=35 // pred_check
          %p873 = pneg %p145
        $region46: #{tpu_custom_call.1} parent=35 // pred_check_branch
          %875 = sbr.rel (%p873) target = $region48
        $region47: #{tpu_custom_call.1} parent=35 // pred_region
          %s876 = smul.u32 16, %s27
          %s878 = ssub.s32 2048, 2048
          %879 = vsyncadd %s869, %s878
          %s880 = smul.addr %s876, 2
          %s881 = smul.addr %s26, 32
          %s882 = sadd.s32 %s880, %s881
          %s883 = smul.addr %s882, 64
          %s884 = scalar_lea.hbm %s4, %s883
          %s885 = sshll.u32 %s872, 4
          %s886 = int_to_ptr.vmem [resolvable:$true] %s885
          %891 = dma.vmem_to_hbm [thread:$0]  %s886, 2048, %s884, %s869, 64, 64, 4
        $region48: #{tpu_custom_call.1} parent=35 // pred_fallthru
          _
      $region36: #{tpu_custom_call.1} parent=5 // pred_fallthru
        _
      %p892 = scmp.le.s32.totalorder 2, %s17
      // Predicated region
      $region49: #{tpu_custom_call.1} parent=5 // pred_check
        %p893 = pneg %p892
      $region50: #{tpu_custom_call.1} parent=5 // pred_check_branch
        %895 = sbr.rel (%p893) target = $region52
      $region51: #{tpu_custom_call.1} parent=5 // pred_region
        %s896 = ssub.s32 %s17, 2
        // Predicated region
        $region53: #{tpu_custom_call.1} parent=51 // pred_check
          %p897 = pneg %p151
        $region54: #{tpu_custom_call.1} parent=51 // pred_check_branch
          %899 = sbr.rel (%p897) target = $region56
        $region55: #{tpu_custom_call.1} parent=51 // pred_region
          %s900 = sand.u32 %s136, 1
          %s901 = scalar_lea.sflag [#allocation4], %s900
          %s902 = sand.u32 %s136, 1
          %s903 = smul.addr %s902, 128
          %s904 = scalar_lea.vmem [#allocation7], %s903
          %905 = dma.done %s901, 2048
        $region56: #{tpu_custom_call.1} parent=51 // pred_fallthru
          _
      $region52: #{tpu_custom_call.1} parent=5 // pred_fallthru
        _
    $region6: #{tpu_custom_call.1} parent=1 // loop_footer
      %s21 = sadd.s32 1, %s17
    $region7: #{tpu_custom_call.1} parent=1 // loop_footer_branch
      %16 = sbr.rel target = $region3
    $region8: #{tpu_custom_call.1} parent=1 // loop_exit
      _
    %906 = vsyncpa [#allocation3], 1
    %s907 = scalar_lea.sflag [#allocation3], 1
    %908 = vsyncpa %s907, 1
    %909 = vsyncpa [#allocation6], 1
    %910 = vsyncpa [#allocation4], 1
    %s911 = scalar_lea.sflag [#allocation4], 1
    %912 = vsyncpa %s911, 1

</llo_original>
